<compile_context>
chip_gen: v6e
topology: v6e:2x2x1
jax: 0.10.0
libtpu: 0.0.40
codegen_flags: <defaults>
</compile_context>

<pallas_src>
import functools

import jax
import jax.numpy as jnp
from jax.experimental import pallas as pl
from jax.experimental.pallas import tpu as pltpu


# --------------------------------------------------------------------------- #
# Fused per-tile feature:  comb' = x[src]@Ws + x[dst]@Wd + edge_attr@We - c
# (bias-free and mean-shifted; the shift `c` is folded into the node table)
# --------------------------------------------------------------------------- #
def _comb_gather(idx_ref, ea_ref, ntab_ref, etab_ref, *, n_nodes):
    """In-kernel MXU gather: one two-hot matmul against a [2N, out] table."""
    tile = idx_ref.shape[0]
    cdt = ntab_ref.dtype
    src = idx_ref[:, 0:1]                                  # [tile, 1] int32
    dst = idx_ref[:, 1:2]
    col = jax.lax.broadcasted_iota(jnp.int32, (tile, 2 * n_nodes), 1)
    twohot = ((col == src) | (col == (dst + n_nodes))).astype(cdt)
    comb = jnp.dot(twohot, ntab_ref[...], preferred_element_type=jnp.float32)
    comb += jnp.dot(ea_ref[...], etab_ref[...], preferred_element_type=jnp.float32)
    return comb


def _comb_pregathered(np_ref, ea_ref, etab_ref):
    """Large-graph path: node term pre-gathered in the wrapper, streamed."""
    return (np_ref[...].astype(jnp.float32)
            + jnp.dot(ea_ref[...], etab_ref[...],
                      preferred_element_type=jnp.float32))


# --------------------------------------------------------------------------- #
# Kernels
# --------------------------------------------------------------------------- #
def _stats_kernel(*refs, comb_fn, n_in, n_valid, tile_e, tiles_per_chunk,
                  mask_from_tile):
    """Pass 1: per-feature sum / sum-of-squares of comb', per parallel chunk."""
    data_refs = refs[:n_in]
    sum_ref, sq_ref = refs[n_in], refs[n_in + 1]
    t = pl.program_id(1)

    @pl.when(t == 0)
    def _init():
        sum_ref[...] = jnp.zeros_like(sum_ref)
        sq_ref[...] = jnp.zeros_like(sq_ref)

    comb = comb_fn(*data_refs)

    def accum(c):
        # Row 0 of the (8, out) accumulator block holds the running sums.
        sum_ref[0:1, :] += jnp.sum(c, axis=0, keepdims=True)
        sq_ref[0:1, :] += jnp.sum(c * c, axis=0, keepdims=True)

    if mask_from_tile is None:          # E is tile-aligned: no masking at all
        accum(comb)
    else:
        g = pl.program_id(0) * tiles_per_chunk + t        # global tile index

        @pl.when(g < mask_from_tile)    # full tiles: mask-free fast path
        def _full():
            accum(comb)

        @pl.when(g >= mask_from_tile)   # tail tiles: mask padded rows
        def _tail():
            row = (g * tile_e
                   + jax.lax.broadcasted_iota(jnp.int32, (comb.shape[0], 1), 0))
            accum(comb * (row < n_valid).astype(comb.dtype))


def _apply_kernel(*refs, comb_fn, n_in):
    """Pass 2: recompute comb', apply folded BatchNorm (one FMA) + ReLU."""
    data_refs = refs[:n_in]
    scale_ref, shift_ref, out_ref = refs[n_in], refs[n_in + 1], refs[n_in + 2]
    comb = comb_fn(*data_refs)
    y = comb * scale_ref[...] + shift_ref[...]
    out_ref[...] = jnp.maximum(y, 0.0).astype(out_ref.dtype)


# --------------------------------------------------------------------------- #
# Wrapper
# --------------------------------------------------------------------------- #
def _round_up(n, m):
    return (n + m - 1) // m * m


def edge_block(x, edge_index, edge_attr, params, *, tile=2048,
               compute_dtype=jnp.float32, gather_node_limit=2048,
               stats_parallel=2, eps=1e-5):
    """x: [N, node_dim] f32; edge_index: [2, E] int; edge_attr: [E, edge_dim] f32.

    tile: edge rows per grid step (>=2048 recommended; blocks are tiny, so big
      tiles amortise the ~0.35us per-step overhead on every generation).
    compute_dtype: jnp.float32 (exact, use on v5e) or jnp.bfloat16 (half HBM
      traffic on v6e/v7x; MXU still accumulates in f32).
    gather_node_limit: above this node count the in-kernel one/two-hot gather
      is replaced by a wrapper-side pre-gather so VMEM residency stays
      independent of N (important on v7x's 64 MiB VMEM).
    stats_parallel: number of independent pass-1 accumulator chunks (>=2 lets
      v7x run pass 1 on both TensorCores; harmless on v5e/v6e).
    """
    E, edge_dim = edge_attr.shape
    n_nodes, node_dim = x.shape
    out_dim = params["w_comb"].shape[1]

    # ---- fuse the 3 Linears (pure algebra, tiny wrapper-side matmuls) -------
    wc_n = params["w_comb"][:out_dim]               # applied to node_proj output
    wc_e = params["w_comb"][out_dim:]               # applied to edge_proj output
    w_src = params["w_node"][:node_dim] @ wc_n      # [node_dim, out_dim]
    w_dst = params["w_node"][node_dim:] @ wc_n
    w_edge = (params["w_edge"] @ wc_e).astype(jnp.float32)   # [edge_dim, out_dim]
    # Linear biases are dropped on purpose: train-mode BatchNorm subtracts the
    # batch mean, so any per-feature constant in `comb` cancels exactly.

    xw_src = x.astype(jnp.float32) @ w_src          # [N, out_dim]
    xw_dst = x.astype(jnp.float32) @ w_dst

    src = edge_index[0].astype(jnp.int32)
    dst = edge_index[1].astype(jnp.int32)
    # TODO(synk): like PyTorch, no bounds checking is done on src/dst here; the
    # two-hot gather silently yields zeros for out-of-range indices.

    # ---- shifted sums: fold a cheap per-feature sample mean into the node
    #      table so pass 1 accumulates (approximately) centred values ---------
    s = int(min(E, 1024))
    samp = (xw_src[src[:s]] + xw_dst[dst[:s]]
            + edge_attr[:s].astype(jnp.float32) @ w_edge)
    c_shift = jnp.mean(samp, axis=0, keepdims=True)          # [1, out_dim]
    xw_src = xw_src - c_shift                                 # comb' = comb - c

    # ---- tiling over E -------------------------------------------------------
    tile_e = max(8, min(_round_up(tile, 8), _round_up(E, 8)))
    n_tiles = (E + tile_e - 1) // tile_e
    n_par = max(1, min(int(stats_parallel), n_tiles))         # pass-1 chunks
    tiles_per_chunk = (n_tiles + n_par - 1) // n_par
    total_tiles = n_par * tiles_per_chunk
    e_pad = total_tiles * tile_e

    gather = n_nodes <= gather_node_limit
    if gather:
        # Indices + edge_attr stream; node table is VMEM-resident.
        a_stream = jnp.stack([src, dst], axis=1)                       # [E, 2]
        node_tab = jnp.concatenate([xw_src, xw_dst], axis=0
                                   ).astype(compute_dtype)             # [2N, out]
        comb_fn = functools.partial(_comb_gather, n_nodes=n_nodes)
    else:
        # Pre-gather the node term once in XLA; stream it (same size as out).
        a_stream = (xw_src[src] + xw_dst[dst]).astype(compute_dtype)   # [E, out]
        node_tab = None
        comb_fn = _comb_pregathered
    etab = w_edge.astype(compute_dtype)                                # [ed, out]
    ea = edge_attr.astype(compute_dtype)

    if e_pad != E:
        pad = ((0, e_pad - E), (0, 0))
        a_stream = jnp.pad(a_stream, pad)
        ea = jnp.pad(ea, pad)
        mask_from_tile = E // tile_e          # first tile containing padding
    else:
        mask_from_tile = None

    a_cols = a_stream.shape[1]
    if gather:
        data_args = (a_stream, ea, node_tab, etab)
    else:
        data_args = (a_stream, ea, etab)
    n_in = len(data_args)

    def data_specs(stream_map, const_map):
        specs = [pl.BlockSpec((tile_e, a_cols), stream_map),
                 pl.BlockSpec((tile_e, edge_dim), stream_map)]
        if gather:
            specs.append(pl.BlockSpec((2 * n_nodes, out_dim), const_map))
        specs.append(pl.BlockSpec((edge_dim, out_dim), const_map))
        return specs

    # ---- pass 1: global batch statistics (parallel chunks x arbitrary tiles) -
    # Accumulator blocks are (8, out_dim) so the block shape satisfies the
    # (8, 128)/full-dim tiling rule; only row 0 of each chunk carries data.
    sums, sqs = pl.pallas_call(
        functools.partial(_stats_kernel, comb_fn=comb_fn, n_in=n_in,
                          n_valid=E, tile_e=tile_e,
                          tiles_per_chunk=tiles_per_chunk,
                          mask_from_tile=mask_from_tile),
        grid=(n_par, tiles_per_chunk),
        in_specs=data_specs(lambda p, t: (p * tiles_per_chunk + t, 0),
                            lambda p, t: (0, 0)),
        out_specs=[pl.BlockSpec((8, out_dim), lambda p, t: (p, 0)),
                   pl.BlockSpec((8, out_dim), lambda p, t: (p, 0))],
        out_shape=[jax.ShapeDtypeStruct((n_par * 8, out_dim), jnp.float32),
                   jax.ShapeDtypeStruct((n_par * 8, out_dim), jnp.float32)],
        compiler_params=pltpu.CompilerParams(
            dimension_semantics=("parallel", "arbitrary")),
    )(*data_args)

    feat_sum = jnp.sum(sums, axis=0, keepdims=True)     # merge partial chunks
    feat_sq = jnp.sum(sqs, axis=0, keepdims=True)

    # ---- fold BatchNorm1d (train mode, biased var) into one scale/shift -----
    mean_s = feat_sum / E                               # mean of shifted comb'
    var = jnp.maximum(feat_sq / E - mean_s * mean_s, 0.0)
    scale = params["bn_w"] * jax.lax.rsqrt(var + eps)   # [1, out_dim]
    shift = params["bn_b"] - mean_s * scale             # shift folds mean' back
    # TODO(synk): PyTorch BatchNorm1d in train mode also updates
    # running_mean/running_var (unbiased); only the forward output is produced.

    # ---- pass 2: recompute comb' per tile, folded BN (FMA) + ReLU ------------
    # (On single-TC v5e/v6e this could be fused with pass 1 into one call; kept
    #  separate so the tile axis stays "parallel" for v7x's two TensorCores.)
    out = pl.pallas_call(
        functools.partial(_apply_kernel, comb_fn=comb_fn, n_in=n_in),
        grid=(total_tiles,),
        in_specs=data_specs(lambda i: (i, 0), lambda i: (0, 0))
                 + [pl.BlockSpec((1, out_dim), lambda i: (0, 0)),
                    pl.BlockSpec((1, out_dim), lambda i: (0, 0))],
        out_specs=pl.BlockSpec((tile_e, out_dim), lambda i: (i, 0)),
        out_shape=jax.ShapeDtypeStruct((e_pad, out_dim), jnp.float32),
        compiler_params=pltpu.CompilerParams(
            dimension_semantics=("parallel",)),
    )(*data_args, scale, shift)

    return out[:E] if e_pad != E else out


# --------------------------------------------------------------------------- #
# Params + pure-JAX reference
# --------------------------------------------------------------------------- #
def init_params(key, node_dim, edge_dim, out_dim):
    """Deterministic synthetic init; weights stored already-transposed ([in, out])."""
    ks = jax.random.split(key, 6)

    def lin(kw, kb, fan_in, fan_out):
        bound = 1.0 / jnp.sqrt(fan_in)
        w = jax.random.uniform(kw, (fan_in, fan_out), jnp.float32, -bound, bound)
        b = jax.random.uniform(kb, (1, fan_out), jnp.float32, -bound, bound)
        return w, b

    w_node, b_node = lin(ks[0], ks[1], 2 * node_dim, out_dim)
    w_edge, b_edge = lin(ks[2], ks[3], edge_dim, out_dim)
    w_comb, b_comb = lin(ks[4], ks[5], 2 * out_dim, out_dim)

    return {
        "w_node": w_node, "b_node": b_node,
        "w_edge": w_edge, "b_edge": b_edge,
        "w_comb": w_comb, "b_comb": b_comb,
        "bn_w": jnp.ones((1, out_dim), jnp.float32),
        "bn_b": jnp.zeros((1, out_dim), jnp.float32),
    }


def edge_block_ref(x, edge_index, edge_attr, params, eps=1e-5):
    """Pure-JAX reference mirroring the PyTorch forward (train-mode BN)."""
    src, dst = edge_index[0], edge_index[1]
    node_cat = jnp.concatenate([x[src], x[dst]], axis=1)
    nf = node_cat @ params["w_node"] + params["b_node"]
    ef = edge_attr @ params["w_edge"] + params["b_edge"]
    comb = jnp.concatenate([nf, ef], axis=1) @ params["w_comb"] + params["b_comb"]
    mean = jnp.mean(comb, axis=0, keepdims=True)
    var = jnp.mean((comb - mean) ** 2, axis=0, keepdims=True)
    y = (comb - mean) / jnp.sqrt(var + eps) * params["bn_w"] + params["bn_b"]
    return jnp.maximum(y, 0.0)


# --------------------------------------------------------------------------- #
if __name__ == "__main__":
    node_dim, edge_dim, out_dim = 16, 8, 32
    num_nodes, num_edges = 10, 200

    key = jax.random.PRNGKey(0)
    k_x, k_ei, k_ea, k_p = jax.random.split(key, 4)

    x = jax.random.normal(k_x, (num_nodes, node_dim), jnp.float32)
    edge_index = jax.random.randint(k_ei, (2, num_edges), 0, num_nodes, jnp.int32)
    edge_attr = jax.random.normal(k_ea, (num_edges, edge_dim), jnp.float32)
    params = init_params(k_p, node_dim, edge_dim, out_dim)

    ref = edge_block_ref(x, edge_index, edge_attr, params)

    # f32, in-kernel MXU two-hot gather; tile=64 exercises a 4-tile grid with
    # 2-way-parallel pass-1 chunks and 56 padded (masked) rows.
    out = edge_block(x, edge_index, edge_attr, params, tile=64,
                     compute_dtype=jnp.float32)
    out = jax.block_until_ready(out)
    assert out.shape == (num_edges, out_dim)
    assert jnp.allclose(out, ref, rtol=2e-4, atol=2e-4), "f32 gather mismatch"

    # Large-graph path (node term pre-gathered in XLA, streamed), default tile.
    out_pg = edge_block(x, edge_index, edge_attr, params,
                        compute_dtype=jnp.float32, gather_node_limit=0)
    out_pg = jax.block_until_ready(out_pg)
    assert jnp.allclose(out_pg, ref, rtol=2e-4, atol=2e-4), "pre-gather mismatch"

    # bf16 activation/weight streaming (f32 MXU accumulation) - the bandwidth
    # option for v6e/v7x; looser tolerance due to bf16 input rounding.
    out_bf16 = edge_block(x, edge_index, edge_attr, params, tile=64,
                          compute_dtype=jnp.bfloat16)
    out_bf16 = jax.block_until_ready(out_bf16)
    assert jnp.allclose(out_bf16, ref, rtol=5e-2, atol=5e-2), "bf16 mismatch"

    print("KERNEL_OK")
</pallas_src>

<mosaic_0001>
module attributes {stable_mosaic.version = 11 : i64} {
  func.func @_stats_kernel(%arg0: i32, %arg1: i32, %arg2: memref<64x2xi32, #tpu.memory_space<vmem>>, %arg3: memref<64x8xf32, #tpu.memory_space<vmem>>, %arg4: memref<20x32xf32, #tpu.memory_space<vmem>>, %arg5: memref<8x32xf32, #tpu.memory_space<vmem>>, %arg6: memref<8x32xf32, #tpu.memory_space<vmem>>, %arg7: memref<8x32xf32, #tpu.memory_space<vmem>>) attributes {dimension_semantics = [#tpu.dimension_semantics<parallel>, #tpu.dimension_semantics<arbitrary>], iteration_bounds = array<i64: 2, 2>, scalar_prefetch = 0 : i64, scratch_operands = 0 : i64, tpu.core_type = #tpu.core_type<tc>, window_params = [{transform_indices = @transform_0, window_bounds = array<i64: 64, 2>}, {transform_indices = @transform_1, window_bounds = array<i64: 64, 8>}, {pipeline_mode = #tpu.pipeline_mode<synchronous>, transform_indices = @transform_2, window_bounds = array<i64: 20, 32>}, {pipeline_mode = #tpu.pipeline_mode<synchronous>, transform_indices = @transform_3, window_bounds = array<i64: 8, 32>}, {transform_indices = @transform_4, window_bounds = array<i64: 8, 32>}, {transform_indices = @transform_5, window_bounds = array<i64: 8, 32>}]} {
    %c0_i32 = arith.constant 0 : i32
    %0 = arith.cmpi eq, %arg1, %c0_i32 : i32
    %1 = arith.extui %0 : i1 to i32
    %c0_i32_0 = arith.constant 0 : i32
    %2 = arith.cmpi ne, %1, %c0_i32_0 : i32
    scf.if %2 {
      %cst_13 = arith.constant 0.000000e+00 : f32
      %29 = vector.broadcast %cst_13 : f32 to vector<8x32xf32>
      %c0_14 = arith.constant 0 : index
      %c0_15 = arith.constant 0 : index
      %30 = vector.load %arg6[%c0_14, %c0_15] : memref<8x32xf32, #tpu.memory_space<vmem>>, vector<8x32xf32>
      tpu.vector_store %arg6[%c0_14, %c0_15], %29 {strides = array<i32>} : memref<8x32xf32, #tpu.memory_space<vmem>>, vector<8x32xf32>,
      %cst_16 = arith.constant 0.000000e+00 : f32
      %31 = vector.broadcast %cst_16 : f32 to vector<8x32xf32>
      %c0_17 = arith.constant 0 : index
      %c0_18 = arith.constant 0 : index
      %32 = vector.load %arg7[%c0_17, %c0_18] : memref<8x32xf32, #tpu.memory_space<vmem>>, vector<8x32xf32>
      tpu.vector_store %arg7[%c0_17, %c0_18], %31 {strides = array<i32>} : memref<8x32xf32, #tpu.memory_space<vmem>>, vector<8x32xf32>,
    } else {
    }
    %c0 = arith.constant 0 : index
    %c0_1 = arith.constant 0 : index
    %3 = vector.load %arg2[%c0, %c0_1] : memref<64x2xi32, #tpu.memory_space<vmem>>, vector<64x1xi32>
    %c0_2 = arith.constant 0 : index
    %c1 = arith.constant 1 : index
    %4 = vector.load %arg2[%c0_2, %c1] : memref<64x2xi32, #tpu.memory_space<vmem>>, vector<64x1xi32>
    %5 = tpu.iota {dimensions = array<i32: 1>} : vector<64x20xi32>
    %6 = vector.broadcast %3 : vector<64x1xi32> to vector<64x20xi32>
    %7 = arith.cmpi eq, %5, %6 : vector<64x20xi32>
    %c10_i32 = arith.constant 10 : i32
    %8 = vector.broadcast %c10_i32 : i32 to vector<64x1xi32>
    %9 = arith.addi %4, %8 : vector<64x1xi32>
    %10 = vector.broadcast %9 : vector<64x1xi32> to vector<64x20xi32>
    %11 = arith.cmpi eq, %5, %10 : vector<64x20xi32>
    %12 = arith.ori %7, %11 : vector<64x20xi1>
    %13 = arith.extui %12 : vector<64x20xi1> to vector<64x20xi32>
    %14 = arith.sitofp %13 : vector<64x20xi32> to vector<64x20xf32>
    %c0_3 = arith.constant 0 : index
    %c0_4 = arith.constant 0 : index
    %15 = vector.load %arg4[%c0_3, %c0_4] : memref<20x32xf32, #tpu.memory_space<vmem>>, vector<20x32xf32>
    %cst = arith.constant dense<0.000000e+00> : vector<64x32xf32>
    %16 = tpu.matmul %14, %15, %cst {dimension_numbers = #tpu.dot_dimension_numbers<[1], [0], [0], [1], [0, 0, 1, 1], [], []>} : vector<64x20xf32>, vector<20x32xf32>, vector<64x32xf32> -> vector<64x32xf32>
    %c0_5 = arith.constant 0 : index
    %c0_6 = arith.constant 0 : index
    %17 = vector.load %arg3[%c0_5, %c0_6] : memref<64x8xf32, #tpu.memory_space<vmem>>, vector<64x8xf32>
    %c0_7 = arith.constant 0 : index
    %c0_8 = arith.constant 0 : index
    %18 = vector.load %arg5[%c0_7, %c0_8] : memref<8x32xf32, #tpu.memory_space<vmem>>, vector<8x32xf32>
    %cst_9 = arith.constant dense<0.000000e+00> : vector<64x32xf32>
    %19 = tpu.matmul %17, %18, %cst_9 {dimension_numbers = #tpu.dot_dimension_numbers<[1], [0], [0], [1], [0, 0, 1, 1], [], []>} : vector<64x8xf32>, vector<8x32xf32>, vector<64x32xf32> -> vector<64x32xf32>
    %20 = arith.addf %16, %19 : vector<64x32xf32>
    %c2_i32 = arith.constant 2 : i32
    %21 = arith.muli %arg0, %c2_i32 : i32
    %22 = arith.addi %21, %arg1 : i32
    %c3_i32 = arith.constant 3 : i32
    %23 = arith.cmpi slt, %22, %c3_i32 : i32
    %24 = arith.extui %23 : i1 to i32
    %c0_i32_10 = arith.constant 0 : i32
    %25 = arith.cmpi ne, %24, %c0_i32_10 : i32
    scf.if %25 {
      %c0_13 = arith.constant 0 : index
      %c0_14 = arith.constant 0 : index
      %29 = vector.load %arg6[%c0_13, %c0_14] : memref<8x32xf32, #tpu.memory_space<vmem>>, vector<1x32xf32>
      %cst_15 = arith.constant dense<0.000000e+00> : vector<32xf32>
      %30 = vector.multi_reduction <add>, %20, %cst_15 [0] : vector<64x32xf32> to vector<32xf32>
      %31 = vector.shape_cast %30 : vector<32xf32> to vector<1x32xf32>
      %32 = arith.addf %29, %31 : vector<1x32xf32>
      %c0_16 = arith.constant 0 : index
      %c0_17 = arith.constant 0 : index
      %33 = vector.load %arg6[%c0_16, %c0_17] : memref<8x32xf32, #tpu.memory_space<vmem>>, vector<1x32xf32>
      tpu.vector_store %arg6[%c0_16, %c0_17], %32 {strides = array<i32>} : memref<8x32xf32, #tpu.memory_space<vmem>>, vector<1x32xf32>,
      %c0_18 = arith.constant 0 : index
      %c0_19 = arith.constant 0 : index
      %34 = vector.load %arg7[%c0_18, %c0_19] : memref<8x32xf32, #tpu.memory_space<vmem>>, vector<1x32xf32>
      %35 = arith.mulf %20, %20 : vector<64x32xf32>
      %cst_20 = arith.constant dense<0.000000e+00> : vector<32xf32>
      %36 = vector.multi_reduction <add>, %35, %cst_20 [0] : vector<64x32xf32> to vector<32xf32>
      %37 = vector.shape_cast %36 : vector<32xf32> to vector<1x32xf32>
      %38 = arith.addf %34, %37 : vector<1x32xf32>
      %c0_21 = arith.constant 0 : index
      %c0_22 = arith.constant 0 : index
      %39 = vector.load %arg7[%c0_21, %c0_22] : memref<8x32xf32, #tpu.memory_space<vmem>>, vector<1x32xf32>
      tpu.vector_store %arg7[%c0_21, %c0_22], %38 {strides = array<i32>} : memref<8x32xf32, #tpu.memory_space<vmem>>, vector<1x32xf32>,
    } else {
    }
    %c3_i32_11 = arith.constant 3 : i32
    %26 = arith.cmpi sge, %22, %c3_i32_11 : i32
    %27 = arith.extui %26 : i1 to i32
    %c0_i32_12 = arith.constant 0 : i32
    %28 = arith.cmpi ne, %27, %c0_i32_12 : i32
    scf.if %28 {
      %c64_i32 = arith.constant 64 : i32
      %29 = arith.muli %22, %c64_i32 : i32
      %30 = tpu.iota {dimensions = array<i32: 0>} : vector<64x1xi32>
      %31 = vector.broadcast %29 : i32 to vector<64x1xi32>
      %32 = arith.addi %31, %30 : vector<64x1xi32>
      %c200_i32 = arith.constant 200 : i32
      %33 = vector.broadcast %c200_i32 : i32 to vector<64x1xi32>
      %34 = arith.cmpi slt, %32, %33 : vector<64x1xi32>
      %35 = arith.extui %34 : vector<64x1xi1> to vector<64x1xi32>
      %36 = arith.sitofp %35 : vector<64x1xi32> to vector<64x1xf32>
      %37 = vector.broadcast %36 : vector<64x1xf32> to vector<64x32xf32>
      %38 = arith.mulf %20, %37 : vector<64x32xf32>
      %c0_13 = arith.constant 0 : index
      %c0_14 = arith.constant 0 : index
      %39 = vector.load %arg6[%c0_13, %c0_14] : memref<8x32xf32, #tpu.memory_space<vmem>>, vector<1x32xf32>
      %cst_15 = arith.constant dense<0.000000e+00> : vector<32xf32>
      %40 = vector.multi_reduction <add>, %38, %cst_15 [0] : vector<64x32xf32> to vector<32xf32>
      %41 = vector.shape_cast %40 : vector<32xf32> to vector<1x32xf32>
      %42 = arith.addf %39, %41 : vector<1x32xf32>
      %c0_16 = arith.constant 0 : index
      %c0_17 = arith.constant 0 : index
      %43 = vector.load %arg6[%c0_16, %c0_17] : memref<8x32xf32, #tpu.memory_space<vmem>>, vector<1x32xf32>
      tpu.vector_store %arg6[%c0_16, %c0_17], %42 {strides = array<i32>} : memref<8x32xf32, #tpu.memory_space<vmem>>, vector<1x32xf32>,
      %c0_18 = arith.constant 0 : index
      %c0_19 = arith.constant 0 : index
      %44 = vector.load %arg7[%c0_18, %c0_19] : memref<8x32xf32, #tpu.memory_space<vmem>>, vector<1x32xf32>
      %45 = arith.mulf %38, %38 : vector<64x32xf32>
      %cst_20 = arith.constant dense<0.000000e+00> : vector<32xf32>
      %46 = vector.multi_reduction <add>, %45, %cst_20 [0] : vector<64x32xf32> to vector<32xf32>
      %47 = vector.shape_cast %46 : vector<32xf32> to vector<1x32xf32>
      %48 = arith.addf %44, %47 : vector<1x32xf32>
      %c0_21 = arith.constant 0 : index
      %c0_22 = arith.constant 0 : index
      %49 = vector.load %arg7[%c0_21, %c0_22] : memref<8x32xf32, #tpu.memory_space<vmem>>, vector<1x32xf32>
      tpu.vector_store %arg7[%c0_21, %c0_22], %48 {strides = array<i32>} : memref<8x32xf32, #tpu.memory_space<vmem>>, vector<1x32xf32>,
    } else {
    }
    return
  }
  func.func @transform_0(%arg0: i32, %arg1: i32) -> (i32, i32) {
    %c2_i32 = arith.constant 2 : i32
    %0 = arith.muli %arg0, %c2_i32 : i32
    %1 = arith.addi %0, %arg1 : i32
    %c0_i32 = arith.constant 0 : i32
    %c0_i32_0 = arith.constant 0 : i32
    return %1, %c0_i32 : i32, i32
  }
  func.func @transform_1(%arg0: i32, %arg1: i32) -> (i32, i32) {
    %c2_i32 = arith.constant 2 : i32
    %0 = arith.muli %arg0, %c2_i32 : i32
    %1 = arith.addi %0, %arg1 : i32
    %c0_i32 = arith.constant 0 : i32
    %c0_i32_0 = arith.constant 0 : i32
    return %1, %c0_i32 : i32, i32
  }
  func.func @transform_2(%arg0: i32, %arg1: i32) -> (i32, i32) {
    %c0_i32 = arith.constant 0 : i32
    %c0_i32_0 = arith.constant 0 : i32
    %c0_i32_1 = arith.constant 0 : i32
    return %c0_i32, %c0_i32_0 : i32, i32
  }
  func.func @transform_3(%arg0: i32, %arg1: i32) -> (i32, i32) {
    %c0_i32 = arith.constant 0 : i32
    %c0_i32_0 = arith.constant 0 : i32
    %c0_i32_1 = arith.constant 0 : i32
    return %c0_i32, %c0_i32_0 : i32, i32
  }
  func.func @transform_4(%arg0: i32, %arg1: i32) -> (i32, i32) {
    %c0_i32 = arith.constant 0 : i32
    %c0_i32_0 = arith.constant 0 : i32
    return %arg0, %c0_i32 : i32, i32
  }
  func.func @transform_5(%arg0: i32, %arg1: i32) -> (i32, i32) {
    %c0_i32 = arith.constant 0 : i32
    %c0_i32_0 = arith.constant 0 : i32
    return %arg0, %c0_i32 : i32, i32
  }
}

</mosaic_0001>

<llo_original>
// kernel: tpu_custom_call.1
$region0: #{tpu_custom_call.1}
  #allocation0 [shape = 'u32[]', space=smem, size = 0x4, offset = 0x4, fixed_abs, tag = 'smem constant byte address 0x4 - core index']
  #allocation1 [shape = 'u32[144,128]{1,0:T(1,128)}', space=vmem, size = 0x12000, scoped, tag = 'internal scratch']
  %s0 = inlined_call_operand.vmem [shape: s32[256,2], index: 0, kind: input, shape index: {}]
  %s1 = inlined_call_operand.vmem [shape: f32[256,8], index: 1, kind: input, shape index: {}]
  %s2 = inlined_call_operand.vmem [shape: f32[20,32], index: 2, kind: input, shape index: {}]
  %s3 = inlined_call_operand.vmem [shape: f32[8,32], index: 3, kind: input, shape index: {}]
  %s4 = inlined_call_operand.hbm [shape: f32[16,32], index: 4, kind: output, shape index: {0}]
  %s5 = inlined_call_operand.hbm [shape: f32[16,32], index: 5, kind: output, shape index: {1}]
  %6 = xla_tuple %s4, %s5
  %s7 = sld [smem:[#allocation0]]
  $region69: #{tpu_custom_call.1} parent=0
    _
  %s9 = ssub.s32 1, %s7
  %s10 = scalar_select 0, %s9, %s7
  $region1: #{tpu_custom_call.1} parent=0
    #allocation2 [shape = 'u8[8192]{0}', space=vmem, size = 0x2000, scoped, tag = 'output window, operand 0']
    #allocation3 [shape = 's32[2]{0}', space=sflag, size = 0x8, scoped, tag = 'scoped memory for tpu_custom_call.1']
    #allocation4 [shape = 'u8[8192]{0}', space=vmem, size = 0x2000, scoped, tag = 'output window, operand 1']
    #allocation5 [shape = 's32[2]{0}', space=sflag, size = 0x8, scoped, tag = 'scoped memory for tpu_custom_call.1']
    %11 = vsyncpa [#allocation3], 0
    %s12 = scalar_lea.sflag [#allocation3], 1
    %13 = vsyncpa %s12, 0
    %14 = vsyncpa [#allocation5], 0
    %s15 = scalar_lea.sflag [#allocation5], 1
    %16 = vsyncpa %s15, 0
    loop: start=0, step=1, limit=6
    $region2: #{tpu_custom_call.1} parent=1 // loop_pre_header
      _
    $region3: #{tpu_custom_call.1} parent=1 // loop_header
      %s18 = sphi 0, %s22
      %p19 = scmp.ge.s32.totalorder %s18, 6
      %s25 = sphi 0, %s37
      %s26 = sphi 0, %s33
      %s27 = sphi 0, %s25
      %s28 = sphi 0, %s26
      %s29 = sphi 0, %s27
      %s30 = sphi 0, %s28
      %s44 = sphi 0, %s46
      %s47 = sphi 0, %s44
      %s48 = sphi 0, %s47
      %s64 = sphi 0, %s48
      %s74 = sphi 0, %s76
      %s77 = sphi 0, %s74
      %s78 = sphi 0, %s77
      %s94 = sphi 0, %s78
      %s98 = sphi 0, %s98
      %s100 = sphi 0, %s98
      %s101 = sphi 0, %s100
      %s115 = sphi 0, %s101
      %s119 = sphi 0, %s119
      %s121 = sphi 0, %s119
      %s122 = sphi 0, %s121
      %s136 = sphi 0, %s122
      %s142 = sphi 0, %s144
      %s145 = sphi 0, %s142
      %s146 = sphi 0, %s145
      %s162 = sphi 0, %s146
      %s168 = sphi 0, %s170
      %s171 = sphi 0, %s168
      %s172 = sphi 0, %s171
      %s188 = sphi 0, %s172
    $region4: #{tpu_custom_call.1} parent=1 // loop_header_branch
      %21 = sbr.rel (%p19) target = $region8
    $region5: #{tpu_custom_call.1} parent=1 // loop_body
      %s23 = ssub.s32 %s18, 1
      %s24 = ssub.s32 %s18, 2
      %s31 = sadd.s32 1, %s26
      %p32 = scmp.ge.s32.totalorder %s31, 2
      %s33 = scalar_select %p32, 0, %s31
      %s34 = sadd.s32 1, %s25
      %s35 = scalar_select %p32, %s34, %s25
      %p36 = scmp.ge.s32.totalorder %s35, 2
      %s37 = scalar_select %p36, 0, %s35
      %s38 = smul.u32 %s25, 2
      %s39 = sadd.s32 %s38, %s26
      %s40 = smul.u32 %s37, 2
      %s41 = sadd.s32 %s40, %s33
      %s42 = ssub.s32 %s39, %s41
      %p43 = scmp.eq.s32.totalorder %s42, 0
      %s45 = sadd.s32 %s44, 1
      %s46 = scalar_select %p43, %s44, %s45
      %p49 = pneg %p43
      %p50 = scmp.eq.s32.totalorder %s18, 3
      %p51 = por %p49, %p50
      %p52 = scmp.ne.s32.totalorder %s44, %s47
      %p53 = scmp.eq.s32.totalorder %s18, 0
      %p54 = por %p52, %p53
      %p55 = scmp.ne.s32.totalorder %s44, %s47
      %p56 = scmp.eq.s32.totalorder %s23, 3
      %p57 = por %p55, %p56
      %p58 = scmp.ne.s32.totalorder %s47, %s48
      %p59 = scmp.eq.s32.totalorder %s23, 0
      %p60 = por %p58, %p59
      %p61 = scmp.ne.s32.totalorder %s47, %s48
      %p62 = scmp.eq.s32.totalorder %s24, 3
      %p63 = por %p61, %p62
      %p65 = scmp.ne.s32.totalorder %s48, %s64
      %p66 = scmp.eq.s32.totalorder %s24, 0
      %p67 = por %p65, %p66
      %s68 = smul.u32 %s25, 2
      %s69 = sadd.s32 %s68, %s26
      %s70 = smul.u32 %s37, 2
      %s71 = sadd.s32 %s70, %s33
      %s72 = ssub.s32 %s69, %s71
      %p73 = scmp.eq.s32.totalorder %s72, 0
      %s75 = sadd.s32 %s74, 1
      %s76 = scalar_select %p73, %s74, %s75
      %p79 = pneg %p73
      %p80 = scmp.eq.s32.totalorder %s18, 3
      %p81 = por %p79, %p80
      %p82 = scmp.ne.s32.totalorder %s74, %s77
      %p83 = scmp.eq.s32.totalorder %s18, 0
      %p84 = por %p82, %p83
      %p85 = scmp.ne.s32.totalorder %s74, %s77
      %p86 = scmp.eq.s32.totalorder %s23, 3
      %p87 = por %p85, %p86
      %p88 = scmp.ne.s32.totalorder %s77, %s78
      %p89 = scmp.eq.s32.totalorder %s23, 0
      %p90 = por %p88, %p89
      %p91 = scmp.ne.s32.totalorder %s77, %s78
      %p92 = scmp.eq.s32.totalorder %s24, 3
      %p93 = por %p91, %p92
      %p95 = scmp.ne.s32.totalorder %s78, %s94
      %p96 = scmp.eq.s32.totalorder %s24, 0
      %p97 = por %p95, %p96
      %s99 = sadd.s32 %s98, 1
      %p102 = scmp.eq.s32.totalorder %s18, 3
      %p103 = scmp.ne.s32.totalorder %s98, %s100
      %p104 = scmp.eq.s32.totalorder %s18, 0
      %p105 = por %p103, %p104
      %p106 = scmp.ne.s32.totalorder %s98, %s100
      %p107 = scmp.eq.s32.totalorder %s23, 3
      %p108 = por %p106, %p107
      %p109 = scmp.ne.s32.totalorder %s100, %s101
      %p110 = scmp.eq.s32.totalorder %s23, 0
      %p111 = por %p109, %p110
      %p112 = scmp.ne.s32.totalorder %s100, %s101
      %p113 = scmp.eq.s32.totalorder %s24, 3
      %p114 = por %p112, %p113
      %p116 = scmp.ne.s32.totalorder %s101, %s115
      %p117 = scmp.eq.s32.totalorder %s24, 0
      %p118 = por %p116, %p117
      %s120 = sadd.s32 %s119, 1
      %p123 = scmp.eq.s32.totalorder %s18, 3
      %p124 = scmp.ne.s32.totalorder %s119, %s121
      %p125 = scmp.eq.s32.totalorder %s18, 0
      %p126 = por %p124, %p125
      %p127 = scmp.ne.s32.totalorder %s119, %s121
      %p128 = scmp.eq.s32.totalorder %s23, 3
      %p129 = por %p127, %p128
      %p130 = scmp.ne.s32.totalorder %s121, %s122
      %p131 = scmp.eq.s32.totalorder %s23, 0
      %p132 = por %p130, %p131
      %p133 = scmp.ne.s32.totalorder %s121, %s122
      %p134 = scmp.eq.s32.totalorder %s24, 3
      %p135 = por %p133, %p134
      %p137 = scmp.ne.s32.totalorder %s122, %s136
      %p138 = scmp.eq.s32.totalorder %s24, 0
      %p139 = por %p137, %p138
      %s140 = ssub.s32 %s25, %s37
      %p141 = scmp.eq.s32.totalorder %s140, 0
      %s143 = sadd.s32 %s142, 1
      %s144 = scalar_select %p141, %s142, %s143
      %p147 = pneg %p141
      %p148 = scmp.eq.s32.totalorder %s18, 3
      %p149 = por %p147, %p148
      %p150 = scmp.ne.s32.totalorder %s142, %s145
      %p151 = scmp.eq.s32.totalorder %s18, 0
      %p152 = por %p150, %p151
      %p153 = scmp.ne.s32.totalorder %s142, %s145
      %p154 = scmp.eq.s32.totalorder %s23, 3
      %p155 = por %p153, %p154
      %p156 = scmp.ne.s32.totalorder %s145, %s146
      %p157 = scmp.eq.s32.totalorder %s23, 0
      %p158 = por %p156, %p157
      %p159 = scmp.ne.s32.totalorder %s145, %s146
      %p160 = scmp.eq.s32.totalorder %s24, 3
      %p161 = por %p159, %p160
      %p163 = scmp.ne.s32.totalorder %s146, %s162
      %p164 = scmp.eq.s32.totalorder %s24, 0
      %p165 = por %p163, %p164
      %s166 = ssub.s32 %s25, %s37
      %p167 = scmp.eq.s32.totalorder %s166, 0
      %s169 = sadd.s32 %s168, 1
      %s170 = scalar_select %p167, %s168, %s169
      %p173 = pneg %p167
      %p174 = scmp.eq.s32.totalorder %s18, 3
      %p175 = por %p173, %p174
      %p176 = scmp.ne.s32.totalorder %s168, %s171
      %p177 = scmp.eq.s32.totalorder %s18, 0
      %p178 = por %p176, %p177
      %p179 = scmp.ne.s32.totalorder %s168, %s171
      %p180 = scmp.eq.s32.totalorder %s23, 3
      %p181 = por %p179, %p180
      %p182 = scmp.ne.s32.totalorder %s171, %s172
      %p183 = scmp.eq.s32.totalorder %s23, 0
      %p184 = por %p182, %p183
      %p185 = scmp.ne.s32.totalorder %s171, %s172
      %p186 = scmp.eq.s32.totalorder %s24, 3
      %p187 = por %p185, %p186
      %p189 = scmp.ne.s32.totalorder %s172, %s188
      %p190 = scmp.eq.s32.totalorder %s24, 0
      %p191 = por %p189, %p190
      %p192 = scmp.le.s32.totalorder 1, %s18
      %p193 = scmp.lt.s32.totalorder %s18, 5
      %p194 = pnand %p192, %p193
      %p195 = pneg %p194
      // Predicated region
      $region9: #{tpu_custom_call.1} parent=5 // pred_check
        _
      $region10: #{tpu_custom_call.1} parent=5 // pred_check_branch
        %197 = sbr.rel (%p194) target = $region12
      $region11: #{tpu_custom_call.1} parent=5 // pred_region
        %s198 = ssub.s32 %s18, 1
        // Predicated region
        $region13: #{tpu_custom_call.1} parent=11 // pred_check
          %p199 = pneg %p111
        $region14: #{tpu_custom_call.1} parent=11 // pred_check_branch
          %201 = sbr.rel (%p199) target = $region16
        $region15: #{tpu_custom_call.1} parent=11 // pred_region
          _
        $region16: #{tpu_custom_call.1} parent=11 // pred_fallthru
          _
        // Predicated region
        $region17: #{tpu_custom_call.1} parent=11 // pred_check
          %p202 = pneg %p132
        $region18: #{tpu_custom_call.1} parent=11 // pred_check_branch
          %204 = sbr.rel (%p202) target = $region20
        $region19: #{tpu_custom_call.1} parent=11 // pred_region
          _
        $region20: #{tpu_custom_call.1} parent=11 // pred_fallthru
          _
      $region12: #{tpu_custom_call.1} parent=5 // pred_fallthru
        _
      %p205 = scmp.lt.s32.totalorder %s18, 4
      // Predicated region
      $region21: #{tpu_custom_call.1} parent=5 // pred_check
        %p206 = pneg %p205
      $region22: #{tpu_custom_call.1} parent=5 // pred_check_branch
        %208 = sbr.rel (%p206) target = $region24
      $region23: #{tpu_custom_call.1} parent=5 // pred_region
        // Predicated region
        $region25: #{tpu_custom_call.1} parent=23 // pred_check
          %p209 = pneg %p54
        $region26: #{tpu_custom_call.1} parent=23 // pred_check_branch
          %211 = sbr.rel (%p209) target = $region28
        $region27: #{tpu_custom_call.1} parent=23 // pred_region
          %s212 = smul.u32 %s25, 2
          %s213 = sadd.s32 %s212, %s26
          %s214 = smul.u32 8, %s213
          %p215 = scmp.lt.s32.totalorder %s214, 31
          %s216 = scalar_select %p215, %s214, 31
          %s217 = smul.addr %s216, 8
          %s218 = scalar_lea.vmem %s0, %s217
          %s219 = smul.u32 %s25, 2
          %s220 = sadd.s32 %s219, %s26
          %s221 = smul.u32 8, %s220
        $region28: #{tpu_custom_call.1} parent=23 // pred_fallthru
          _
        // Predicated region
        $region29: #{tpu_custom_call.1} parent=23 // pred_check
          %p222 = pneg %p84
        $region30: #{tpu_custom_call.1} parent=23 // pred_check_branch
          %224 = sbr.rel (%p222) target = $region32
        $region31: #{tpu_custom_call.1} parent=23 // pred_region
          %s225 = smul.u32 %s25, 2
          %s226 = sadd.s32 %s225, %s26
          %s227 = smul.u32 8, %s226
          %p228 = scmp.lt.s32.totalorder %s227, 31
          %s229 = scalar_select %p228, %s227, 31
          %s230 = smul.addr %s229, 8
          %s231 = scalar_lea.vmem %s1, %s230
          %s232 = smul.u32 %s25, 2
          %s233 = sadd.s32 %s232, %s26
          %s234 = smul.u32 8, %s233
        $region32: #{tpu_custom_call.1} parent=23 // pred_fallthru
          _
      $region24: #{tpu_custom_call.1} parent=5 // pred_fallthru
        _
      %p235 = scmp.le.s32.totalorder 1, %s18
      %p236 = scmp.lt.s32.totalorder %s18, 5
      %p237 = pnand %p235, %p236
      %p238 = pneg %p237
      // Predicated region
      $region33: #{tpu_custom_call.1} parent=5 // pred_check
        _
      $region34: #{tpu_custom_call.1} parent=5 // pred_check_branch
        %240 = sbr.rel (%p237) target = $region36
      $region35: #{tpu_custom_call.1} parent=5 // pred_region
        %s241 = ssub.s32 %s18, 1
        %s242 = smul.u32 %s27, 2
        %s243 = sadd.s32 %s242, %s28
        %s244 = smul.u32 8, %s243
        %p245 = scmp.lt.s32.totalorder %s244, 31
        %s246 = scalar_select %p245, %s244, 31
        %s247 = smul.addr %s246, 8
        %s248 = scalar_lea.vmem %s0, %s247
        %p249 = pneg %p60
        %p250 = pneg %p57
        %s251 = smul.u32 %s27, 2
        %s252 = sadd.s32 %s251, %s28
        %s253 = smul.u32 8, %s252
        %p254 = scmp.lt.s32.totalorder %s253, 31
        %s255 = scalar_select %p254, %s253, 31
        %s256 = smul.addr %s255, 8
        %s257 = scalar_lea.vmem %s1, %s256
        %p258 = pneg %p90
        %p259 = pneg %p87
        %p260 = pneg %p111
        %p261 = pneg %p108
        %p262 = pneg %p132
        %p263 = pneg %p129
        %p264 = pneg %p158
        %p265 = pneg %p155
        %s266 = sand.u32 %s145, 1
        %s267 = scalar_lea.sflag [#allocation3], %s266
        %s268 = sand.u32 %s145, 1
        %s269 = smul.addr %s268, 8
        %s270 = scalar_lea.vmem [#allocation2], %s269
        %p271 = pneg %p184
        %p272 = pneg %p181
        %s273 = sand.u32 %s171, 1
        %s274 = scalar_lea.sflag [#allocation5], %s273
        %s275 = sand.u32 %s171, 1
        %s276 = smul.addr %s275, 8
        %s277 = scalar_lea.vmem [#allocation4], %s276
        %s278 = smul.u32 %s27, 2
        %s279 = sadd.s32 %s278, %s28
        %s280 = smul.u32 8, %s279
        %p281 = scmp.lt.s32.totalorder %s280, 31
        %s282 = scalar_select %p281, %s280, 31
        %s283 = smul.addr %s282, 8
        %s284 = scalar_lea.vmem %s0, %s283
        %s285 = smul.u32 %s27, 2
        %s286 = sadd.s32 %s285, %s28
        %s287 = smul.u32 8, %s286
        %s288 = smul.u32 %s27, 2
        %s289 = sadd.s32 %s288, %s28
        %s290 = smul.u32 8, %s289
        %p291 = scmp.lt.s32.totalorder %s290, 31
        %s292 = scalar_select %p291, %s290, 31
        %s293 = smul.addr %s292, 8
        %s294 = scalar_lea.vmem %s1, %s293
        %s295 = smul.u32 %s27, 2
        %s296 = sadd.s32 %s295, %s28
        %s297 = smul.u32 8, %s296
        %p298 = scmp.eq.s32.totalorder %s28, 0
        // Predicated region
        $region37: #{tpu_custom_call.1} parent=35 // pred_check
          %p299 = pneg %p298
        $region38: #{tpu_custom_call.1} parent=35 // pred_check_branch
          %301 = sbr.rel (%p299) target = $region40
        $region39: #{tpu_custom_call.1} parent=35 // pred_region
          %vm302 = vcmask 261120
          %303 = vst.msk [vmem:[%s270] sm:$0xff] %vm302, 0.0
          %304 = vst.msk [vmem:[%s277] sm:$0xff] %vm302, 0.0
        $region40: #{tpu_custom_call.1} parent=35 // pred_fallthru
          _
        %v305 = vld [vmem:[%s284] sm:$0xff]
        %v306 = vld [vmem:[%s284 + $0x8] sm:$0xff]
        %v307 = vld [vmem:[%s284 + $0x10] sm:$0xff]
        %v308 = vld [vmem:[%s284 + $0x18] sm:$0xff]
        %v309 = vld [vmem:[%s284 + $0x20] sm:$0xff]
        %v310 = vld [vmem:[%s284 + $0x28] sm:$0xff]
        %v311 = vld [vmem:[%s284 + $0x30] sm:$0xff]
        %v312 = vld [vmem:[%s284 + $0x38] sm:$0xff]
        %v313 = vlaneseq
        %v314 = vand.u32 %v313, 127
        %315 = vset.pattern.permute.xlu0 0
        %316 = vperm.xlu0 %315, %v305
        %v317 = vpop.permute.xlu0 %316
        %318 = vset.pattern.permute.xlu0 0
        %319 = vperm.xlu0 %318, %v306
        %v320 = vpop.permute.xlu0 %319
        %321 = vset.pattern.permute.xlu0 0
        %322 = vperm.xlu0 %321, %v307
        %v323 = vpop.permute.xlu0 %322
        %324 = vset.pattern.permute.xlu0 0
        %325 = vperm.xlu0 %324, %v308
        %v326 = vpop.permute.xlu0 %325
        %327 = vset.pattern.permute.xlu0 0
        %328 = vperm.xlu0 %327, %v309
        %v329 = vpop.permute.xlu0 %328
        %330 = vset.pattern.permute.xlu0 0
        %331 = vperm.xlu0 %330, %v310
        %v332 = vpop.permute.xlu0 %331
        %333 = vset.pattern.permute.xlu0 0
        %334 = vperm.xlu0 %333, %v311
        %v335 = vpop.permute.xlu0 %334
        %336 = vset.pattern.permute.xlu0 0
        %337 = vperm.xlu0 %336, %v312
        %v338 = vpop.permute.xlu0 %337
        %vm339 = vcmp.eq.s32.totalorder %v314, %v317
        %vm340 = vcmp.eq.s32.totalorder %v314, %v320
        %vm341 = vcmp.eq.s32.totalorder %v314, %v323
        %vm342 = vcmp.eq.s32.totalorder %v314, %v326
        %vm343 = vcmp.eq.s32.totalorder %v314, %v329
        %vm344 = vcmp.eq.s32.totalorder %v314, %v332
        %vm345 = vcmp.eq.s32.totalorder %v314, %v335
        %vm346 = vcmp.eq.s32.totalorder %v314, %v338
        %v347 = vadd.s32 %v305, 10
        %v348 = vadd.s32 %v306, 10
        %v349 = vadd.s32 %v307, 10
        %v350 = vadd.s32 %v308, 10
        %v351 = vadd.s32 %v309, 10
        %v352 = vadd.s32 %v310, 10
        %v353 = vadd.s32 %v311, 10
        %v354 = vadd.s32 %v312, 10
        %355 = vset.pattern.permute.xlu0 1
        %356 = vperm.xlu0 %355, %v347
        %v357 = vpop.permute.xlu0 %356
        %358 = vset.pattern.permute.xlu0 1
        %359 = vperm.xlu0 %358, %v348
        %v360 = vpop.permute.xlu0 %359
        %361 = vset.pattern.permute.xlu0 1
        %362 = vperm.xlu0 %361, %v349
        %v363 = vpop.permute.xlu0 %362
        %364 = vset.pattern.permute.xlu0 1
        %365 = vperm.xlu0 %364, %v350
        %v366 = vpop.permute.xlu0 %365
        %367 = vset.pattern.permute.xlu0 1
        %368 = vperm.xlu0 %367, %v351
        %v369 = vpop.permute.xlu0 %368
        %370 = vset.pattern.permute.xlu0 1
        %371 = vperm.xlu0 %370, %v352
        %v372 = vpop.permute.xlu0 %371
        %373 = vset.pattern.permute.xlu0 1
        %374 = vperm.xlu0 %373, %v353
        %v375 = vpop.permute.xlu0 %374
        %376 = vset.pattern.permute.xlu0 1
        %377 = vperm.xlu0 %376, %v354
        %v378 = vpop.permute.xlu0 %377
        %vm379 = vcmp.eq.s32.totalorder %v314, %v357
        %vm380 = vcmp.eq.s32.totalorder %v314, %v360
        %vm381 = vcmp.eq.s32.totalorder %v314, %v363
        %vm382 = vcmp.eq.s32.totalorder %v314, %v366
        %vm383 = vcmp.eq.s32.totalorder %v314, %v369
        %vm384 = vcmp.eq.s32.totalorder %v314, %v372
        %vm385 = vcmp.eq.s32.totalorder %v314, %v375
        %vm386 = vcmp.eq.s32.totalorder %v314, %v378
        %vm387 = vmor %vm339, %vm379
        %vm388 = vmor %vm340, %vm380
        %vm389 = vmor %vm341, %vm381
        %vm390 = vmor %vm342, %vm382
        %vm391 = vmor %vm343, %vm383
        %vm392 = vmor %vm344, %vm384
        %vm393 = vmor %vm345, %vm385
        %vm394 = vmor %vm346, %vm386
        %v395 = vsel %vm387, 1, 0
        %v396 = vsel %vm388, 1, 0
        %v397 = vsel %vm389, 1, 0
        %v398 = vsel %vm390, 1, 0
        %v399 = vsel %vm391, 1, 0
        %v400 = vsel %vm392, 1, 0
        %v401 = vsel %vm393, 1, 0
        %v402 = vsel %vm394, 1, 0
        %v403 = vcvt.s32.f32 %v395
        %v404 = vcvt.s32.f32 %v396
        %v405 = vcvt.s32.f32 %v397
        %v406 = vcvt.s32.f32 %v398
        %v407 = vcvt.s32.f32 %v399
        %v408 = vcvt.s32.f32 %v400
        %v409 = vcvt.s32.f32 %v401
        %v410 = vcvt.s32.f32 %v402
        %v411 = vld [vmem:[%s2] sm:$0xff]
        %v412 = vld [vmem:[%s2 + $0x8] sm:$0xff]
        %v413 = vld [vmem:[%s2 + $0x10] sm:$0xf]
        %v414 = vld [vmem:[%s294] sm:$0xff]
        %v415 = vld [vmem:[%s294 + $0x8] sm:$0xff]
        %v416 = vld [vmem:[%s294 + $0x10] sm:$0xff]
        %v417 = vld [vmem:[%s294 + $0x18] sm:$0xff]
        %v418 = vld [vmem:[%s294 + $0x20] sm:$0xff]
        %v419 = vld [vmem:[%s294 + $0x28] sm:$0xff]
        %v420 = vld [vmem:[%s294 + $0x30] sm:$0xff]
        %v421 = vld [vmem:[%s294 + $0x38] sm:$0xff]
        %v422 = vld [vmem:[%s3] sm:$0xff]
        %vm423 = vcmask 64512
        %v425 = vsel %vm423, %v414, 0
        %v428 = vsel %vm423, %v415, 0
        %v431 = vsel %vm423, %v416, 0
        %v434 = vsel %vm423, %v417, 0
        %v437 = vsel %vm423, %v418, 0
        %v440 = vsel %vm423, %v419, 0
        %v443 = vsel %vm423, %v420, 0
        %v446 = vsel %vm423, %v421, 0
        %448 = vmatprep.subr.mxu0 0.0
        %449 = vmatpush1.msra.mxu0 0.0
        %450 = vmatprep.subr.mxu0 0.0
        %451 = vmatpush1.msra.mxu0 0.0
        %452 = vmatprep.subr.mxu0 0.0
        %453 = vmatpush1.msra.mxu0 0.0
        %454 = vmatprep.subr.mxu0 0.0
        %455 = vmatpush1.msra.mxu0 0.0
        %456 = vmatprep.subr.mxu0 0.0
        %457 = vmatpush1.msra.mxu0 0.0
        %458 = vmatprep.subr.mxu0 0.0
        %459 = vmatpush1.msra.mxu0 0.0
        %460 = vmatprep.subr.mxu0 0.0
        %461 = vmatpush1.msra.mxu0 0.0
        %462 = vmatprep.subr.mxu0 0.0
        %463 = vmatpush1.msra.mxu0 0.0
        %464 = vmatprep.subr.mxu0 0.0
        %465 = vmatpush1.msra.mxu0 0.0
        %466 = vmatprep.subr.mxu0 0.0
        %467 = vmatpush1.msra.mxu0 0.0
        %468 = vmatprep.subr.mxu0 0.0
        %469 = vmatpush1.msra.mxu0 0.0
        %470 = vmatprep.subr.mxu0 0.0
        %471 = vmatpush1.msra.mxu0 0.0
        %472 = vmatprep.subr.mxu0 0.0
        %473 = vmatpush1.msra.mxu0 0.0
        %474 = vmatprep.subr.mxu0 0.0
        %475 = vmatpush1.msra.mxu0 0.0
        %476 = vmatprep.subr.mxu0 0.0
        %477 = vmatpush1.msra.mxu0 0.0
        %478 = vmatprep.subr.mxu0 0.0
        %479 = vmatpush1.msra.mxu0 %v422
        %480 = vmatprep.subr.mxu0 0.0
        %481 = vmatpush2.msra.mxu0 0.0
        %482 = vmatprep.subr.mxu0 0.0
        %483 = vmatpush2.msra.mxu0 0.0
        %484 = vmatprep.subr.mxu0 0.0
        %485 = vmatpush2.msra.mxu0 0.0
        %486 = vmatprep.subr.mxu0 0.0
        %487 = vmatpush2.msra.mxu0 0.0
        %488 = vmatprep.subr.mxu0 0.0
        %489 = vmatpush2.msra.mxu0 0.0
        %490 = vmatprep.subr.mxu0 0.0
        %491 = vmatpush2.msra.mxu0 0.0
        %492 = vmatprep.subr.mxu0 0.0
        %493 = vmatpush2.msra.mxu0 0.0
        %494 = vmatprep.subr.mxu0 0.0
        %495 = vmatpush2.msra.mxu0 0.0
        %496 = vmatprep.subr.mxu0 0.0
        %497 = vmatpush2.msra.mxu0 0.0
        %498 = vmatprep.subr.mxu0 0.0
        %499 = vmatpush2.msra.mxu0 0.0
        %500 = vmatprep.subr.mxu0 0.0
        %501 = vmatpush2.msra.mxu0 0.0
        %502 = vmatprep.subr.mxu0 0.0
        %503 = vmatpush2.msra.mxu0 0.0
        %504 = vmatprep.subr.mxu0 0.0
        %505 = vmatpush2.msra.mxu0 0.0
        %506 = vmatprep.subr.mxu0 0.0
        %507 = vmatpush2.msra.mxu0 0.0
        %508 = vmatprep.subr.mxu0 0.0
        %509 = vmatpush2.msra.mxu0 0.0
        %510 = vmatprep.subr.mxu0 0.0
        %511 = vmatpush2.msra.mxu0 0.0
        %512 = vmatprep.mubr.f32.mxu0 0.0
        %513 = vmatmul.mubr.f32.gmra.mxu0 %v425
        %v514 = vpop.f32.mrf.mxu0
        %v515 = vadd.f32 0.0, %v514
        %v516 = vpop.f32.mrf.mxu0
        %517 = vmatprep.mubr.f32.mxu0 0.0
        %518 = vmatmul.mubr.f32.gmra.mxu0 %v428
        %v519 = vpop.f32.mrf.mxu0
        %v520 = vadd.f32 0.0, %v519
        %v521 = vpop.f32.mrf.mxu0
        %522 = vmatprep.mubr.f32.mxu0 0.0
        %523 = vmatmul.mubr.f32.gmra.mxu0 %v431
        %v524 = vpop.f32.mrf.mxu0
        %v525 = vadd.f32 0.0, %v524
        %v526 = vpop.f32.mrf.mxu0
        %527 = vmatprep.mubr.f32.mxu0 0.0
        %528 = vmatmul.mubr.f32.gmra.mxu0 %v434
        %v529 = vpop.f32.mrf.mxu0
        %v530 = vadd.f32 0.0, %v529
        %v531 = vpop.f32.mrf.mxu0
        %532 = vmatprep.mubr.f32.mxu0 0.0
        %533 = vmatmul.mubr.f32.gmra.mxu0 %v437
        %v534 = vpop.f32.mrf.mxu0
        %v535 = vadd.f32 0.0, %v534
        %v536 = vpop.f32.mrf.mxu0
        %537 = vmatprep.mubr.f32.mxu0 0.0
        %538 = vmatmul.mubr.f32.gmra.mxu0 %v440
        %v539 = vpop.f32.mrf.mxu0
        %v540 = vadd.f32 0.0, %v539
        %v541 = vpop.f32.mrf.mxu0
        %542 = vmatprep.mubr.f32.mxu0 0.0
        %543 = vmatmul.mubr.f32.gmra.mxu0 %v443
        %v544 = vpop.f32.mrf.mxu0
        %v545 = vadd.f32 0.0, %v544
        %v546 = vpop.f32.mrf.mxu0
        %547 = vmatprep.mubr.f32.mxu0 0.0
        %548 = vmatmul.mubr.f32.gmra.mxu0 %v446
        %v549 = vpop.f32.mrf.mxu0
        %v550 = vadd.f32 0.0, %v549
        %v551 = vpop.f32.mrf.mxu0
        %552 = vdwg.mxu0
        %vm553 = vcmask 162816
        %v555 = vsel %vm553, %v403, 0
        %v558 = vsel %vm553, %v404, 0
        %v561 = vsel %vm553, %v405, 0
        %v564 = vsel %vm553, %v406, 0
        %v567 = vsel %vm553, %v407, 0
        %v570 = vsel %vm553, %v408, 0
        %v573 = vsel %vm553, %v409, 0
        %v576 = vsel %vm553, %v410, 0
        %vm578 = vcmask 1043456
        %v580 = vsel %vm578, %v413, 0
        %582 = vmatprep.subr.mxu0 0.0
        %583 = vmatpush1.msra.mxu0 0.0
        %584 = vmatprep.subr.mxu0 0.0
        %585 = vmatpush1.msra.mxu0 0.0
        %586 = vmatprep.subr.mxu0 0.0
        %587 = vmatpush1.msra.mxu0 0.0
        %588 = vmatprep.subr.mxu0 0.0
        %589 = vmatpush1.msra.mxu0 0.0
        %590 = vmatprep.subr.mxu0 0.0
        %591 = vmatpush1.msra.mxu0 0.0
        %592 = vmatprep.subr.mxu0 0.0
        %593 = vmatpush1.msra.mxu0 0.0
        %594 = vmatprep.subr.mxu0 0.0
        %595 = vmatpush1.msra.mxu0 0.0
        %596 = vmatprep.subr.mxu0 0.0
        %597 = vmatpush1.msra.mxu0 0.0
        %598 = vmatprep.subr.mxu0 0.0
        %599 = vmatpush1.msra.mxu0 0.0
        %600 = vmatprep.subr.mxu0 0.0
        %601 = vmatpush1.msra.mxu0 0.0
        %602 = vmatprep.subr.mxu0 0.0
        %603 = vmatpush1.msra.mxu0 0.0
        %604 = vmatprep.subr.mxu0 0.0
        %605 = vmatpush1.msra.mxu0 0.0
        %606 = vmatprep.subr.mxu0 0.0
        %607 = vmatpush1.msra.mxu0 0.0
        %608 = vmatprep.subr.mxu0 0.0
        %609 = vmatpush1.msra.mxu0 %v580
        %610 = vmatprep.subr.mxu0 0.0
        %611 = vmatpush1.msra.mxu0 %v412
        %612 = vmatprep.subr.mxu0 0.0
        %613 = vmatpush1.msra.mxu0 %v411
        %614 = vmatprep.subr.mxu0 0.0
        %615 = vmatpush2.msra.mxu0 0.0
        %616 = vmatprep.subr.mxu0 0.0
        %617 = vmatpush2.msra.mxu0 0.0
        %618 = vmatprep.subr.mxu0 0.0
        %619 = vmatpush2.msra.mxu0 0.0
        %620 = vmatprep.subr.mxu0 0.0
        %621 = vmatpush2.msra.mxu0 0.0
        %622 = vmatprep.subr.mxu0 0.0
        %623 = vmatpush2.msra.mxu0 0.0
        %624 = vmatprep.subr.mxu0 0.0
        %625 = vmatpush2.msra.mxu0 0.0
        %626 = vmatprep.subr.mxu0 0.0
        %627 = vmatpush2.msra.mxu0 0.0
        %628 = vmatprep.subr.mxu0 0.0
        %629 = vmatpush2.msra.mxu0 0.0
        %630 = vmatprep.subr.mxu0 0.0
        %631 = vmatpush2.msra.mxu0 0.0
        %632 = vmatprep.subr.mxu0 0.0
        %633 = vmatpush2.msra.mxu0 0.0
        %634 = vmatprep.subr.mxu0 0.0
        %635 = vmatpush2.msra.mxu0 0.0
        %636 = vmatprep.subr.mxu0 0.0
        %637 = vmatpush2.msra.mxu0 0.0
        %638 = vmatprep.subr.mxu0 0.0
        %639 = vmatpush2.msra.mxu0 0.0
        %640 = vmatprep.subr.mxu0 0.0
        %641 = vmatpush2.msra.mxu0 0.0
        %642 = vmatprep.subr.mxu0 0.0
        %643 = vmatpush2.msra.mxu0 0.0
        %644 = vmatprep.subr.mxu0 0.0
        %645 = vmatpush2.msra.mxu0 0.0
        %646 = vmatprep.mubr.f32.mxu0 0.0
        %647 = vmatmul.mubr.f32.gmra.mxu0 %v555
        %v648 = vpop.f32.mrf.mxu0
        %v649 = vadd.f32 %v515, %v648
        %v650 = vpop.f32.mrf.mxu0
        %651 = vmatprep.mubr.f32.mxu0 0.0
        %652 = vmatmul.mubr.f32.gmra.mxu0 %v558
        %v653 = vpop.f32.mrf.mxu0
        %v654 = vadd.f32 %v520, %v653
        %v655 = vpop.f32.mrf.mxu0
        %656 = vmatprep.mubr.f32.mxu0 0.0
        %657 = vmatmul.mubr.f32.gmra.mxu0 %v561
        %v658 = vpop.f32.mrf.mxu0
        %v659 = vadd.f32 %v525, %v658
        %v660 = vpop.f32.mrf.mxu0
        %661 = vmatprep.mubr.f32.mxu0 0.0
        %662 = vmatmul.mubr.f32.gmra.mxu0 %v564
        %v663 = vpop.f32.mrf.mxu0
        %v664 = vadd.f32 %v530, %v663
        %v665 = vpop.f32.mrf.mxu0
        %666 = vmatprep.mubr.f32.mxu0 0.0
        %667 = vmatmul.mubr.f32.gmra.mxu0 %v567
        %v668 = vpop.f32.mrf.mxu0
        %v669 = vadd.f32 %v535, %v668
        %v670 = vpop.f32.mrf.mxu0
        %671 = vmatprep.mubr.f32.mxu0 0.0
        %672 = vmatmul.mubr.f32.gmra.mxu0 %v570
        %v673 = vpop.f32.mrf.mxu0
        %v674 = vadd.f32 %v540, %v673
        %v675 = vpop.f32.mrf.mxu0
        %676 = vmatprep.mubr.f32.mxu0 0.0
        %677 = vmatmul.mubr.f32.gmra.mxu0 %v573
        %v678 = vpop.f32.mrf.mxu0
        %v679 = vadd.f32 %v545, %v678
        %v680 = vpop.f32.mrf.mxu0
        %681 = vmatprep.mubr.f32.mxu0 0.0
        %682 = vmatmul.mubr.f32.gmra.mxu0 %v576
        %v683 = vpop.f32.mrf.mxu0
        %v684 = vadd.f32 %v550, %v683
        %v685 = vpop.f32.mrf.mxu0
        %686 = vdwg.mxu0
        %s687 = smul.u32 %s27, 2
        %s688 = sadd.s32 %s687, %s28
        %p689 = scmp.lt.s32.totalorder %s688, 3
        // Predicated region
        $region41: #{tpu_custom_call.1} parent=35 // pred_check
          %p690 = pneg %p689
        $region42: #{tpu_custom_call.1} parent=35 // pred_check_branch
          %692 = sbr.rel (%p690) target = $region44
        $region43: #{tpu_custom_call.1} parent=35 // pred_region
          %v693 = vld [vmem:[%s270] sm:$0x1]
          %vm694 = vcmask 261120
          %v695 = vsel %vm694, %v649, 0.0
          %v696 = vsel %vm694, %v654, 0.0
          %v697 = vadd.f32 %v695, %v696
          %v698 = vsel %vm694, %v659, 0.0
          %v699 = vadd.f32 %v697, %v698
          %v700 = vsel %vm694, %v664, 0.0
          %v701 = vadd.f32 %v699, %v700
          %v702 = vsel %vm694, %v669, 0.0
          %v703 = vadd.f32 %v701, %v702
          %v704 = vsel %vm694, %v674, 0.0
          %v705 = vadd.f32 %v703, %v704
          %v706 = vsel %vm694, %v679, 0.0
          %v707 = vadd.f32 %v705, %v706
          %v708 = vsel %vm694, %v684, 0.0
          %v709 = vadd.f32 %v707, %v708
          %v710 = vrot.slane %v709, 4
          %v711 = vadd.f32 %v709, %v710
          %v712 = vrot.slane %v711, 2
          %v713 = vadd.f32 %v711, %v712
          %v714 = vrot.slane %v713, 1
          %v715 = vadd.f32 %v713, %v714
          %v716 = vadd.f32 %v693, %v715
          %vm717 = vcmask 253952
          %718 = vst.msk [vmem:[%s270] sm:$0x1] %vm717, %v716
          %v719 = vld [vmem:[%s277] sm:$0x1]
          %v720 = vmul.f32 %v649, %v649
          %v721 = vmul.f32 %v654, %v654
          %v722 = vmul.f32 %v659, %v659
          %v723 = vmul.f32 %v664, %v664
          %v724 = vmul.f32 %v669, %v669
          %v725 = vmul.f32 %v674, %v674
          %v726 = vmul.f32 %v679, %v679
          %v727 = vmul.f32 %v684, %v684
          %v728 = vsel %vm694, %v720, 0.0
          %v729 = vsel %vm694, %v721, 0.0
          %v730 = vadd.f32 %v728, %v729
          %v731 = vsel %vm694, %v722, 0.0
          %v732 = vadd.f32 %v730, %v731
          %v733 = vsel %vm694, %v723, 0.0
          %v734 = vadd.f32 %v732, %v733
          %v735 = vsel %vm694, %v724, 0.0
          %v736 = vadd.f32 %v734, %v735
          %v737 = vsel %vm694, %v725, 0.0
          %v738 = vadd.f32 %v736, %v737
          %v739 = vsel %vm694, %v726, 0.0
          %v740 = vadd.f32 %v738, %v739
          %v741 = vsel %vm694, %v727, 0.0
          %v742 = vadd.f32 %v740, %v741
          %v743 = vrot.slane %v742, 4
          %v744 = vadd.f32 %v742, %v743
          %v745 = vrot.slane %v744, 2
          %v746 = vadd.f32 %v744, %v745
          %v747 = vrot.slane %v746, 1
          %v748 = vadd.f32 %v746, %v747
          %v749 = vadd.f32 %v719, %v748
          %750 = vst.msk [vmem:[%s277] sm:$0x1] %vm717, %v749
        $region44: #{tpu_custom_call.1} parent=35 // pred_fallthru
          _
        %p751 = scmp.ge.s32.totalorder %s688, 3
        // Predicated region
        $region45: #{tpu_custom_call.1} parent=35 // pred_check
          %p752 = pneg %p751
        $region46: #{tpu_custom_call.1} parent=35 // pred_check_branch
          %754 = sbr.rel (%p752) target = $region48
        $region47: #{tpu_custom_call.1} parent=35 // pred_region
          %s755 = smul.u32 %s688, 64
          %v756 = vlaneseq
          %v757 = vshrl.u32 %v756, 7
          %v758 = vadd.s32 %v757, 8
          %v759 = vadd.s32 %v757, 16
          %v760 = vadd.s32 %v757, 24
          %v761 = vadd.s32 %v757, 32
          %v762 = vadd.s32 %v757, 40
          %v763 = vadd.s32 %v757, 48
          %v764 = vadd.s32 %v757, 56
          %v765 = vstv %s755
          %v766 = vadd.s32 %v765, %v757
          %v767 = vadd.s32 %v765, %v758
          %v768 = vadd.s32 %v765, %v759
          %v769 = vadd.s32 %v765, %v760
          %v770 = vadd.s32 %v765, %v761
          %v771 = vadd.s32 %v765, %v762
          %v772 = vadd.s32 %v765, %v763
          %v773 = vadd.s32 %v765, %v764
          %vm774 = vcmp.lt.s32.totalorder %v766, 200
          %vm775 = vcmp.lt.s32.totalorder %v767, 200
          %vm776 = vcmp.lt.s32.totalorder %v768, 200
          %vm777 = vcmp.lt.s32.totalorder %v769, 200
          %vm778 = vcmp.lt.s32.totalorder %v770, 200
          %vm779 = vcmp.lt.s32.totalorder %v771, 200
          %vm780 = vcmp.lt.s32.totalorder %v772, 200
          %vm781 = vcmp.lt.s32.totalorder %v773, 200
          %v782 = vsel %vm774, 1, 0
          %v783 = vsel %vm775, 1, 0
          %v784 = vsel %vm776, 1, 0
          %v785 = vsel %vm777, 1, 0
          %v786 = vsel %vm778, 1, 0
          %v787 = vsel %vm779, 1, 0
          %v788 = vsel %vm780, 1, 0
          %v789 = vsel %vm781, 1, 0
          %v790 = vcvt.s32.f32 %v782
          %v791 = vcvt.s32.f32 %v783
          %v792 = vcvt.s32.f32 %v784
          %v793 = vcvt.s32.f32 %v785
          %v794 = vcvt.s32.f32 %v786
          %v795 = vcvt.s32.f32 %v787
          %v796 = vcvt.s32.f32 %v788
          %v797 = vcvt.s32.f32 %v789
          %v798 = vmul.f32 %v649, %v790
          %v799 = vmul.f32 %v654, %v791
          %v800 = vmul.f32 %v659, %v792
          %v801 = vmul.f32 %v664, %v793
          %v802 = vmul.f32 %v669, %v794
          %v803 = vmul.f32 %v674, %v795
          %v804 = vmul.f32 %v679, %v796
          %v805 = vmul.f32 %v684, %v797
          %v806 = vld [vmem:[%s270] sm:$0x1]
          %vm807 = vcmask 261120
          %v808 = vsel %vm807, %v798, 0.0
          %v809 = vsel %vm807, %v799, 0.0
          %v810 = vadd.f32 %v808, %v809
          %v811 = vsel %vm807, %v800, 0.0
          %v812 = vadd.f32 %v810, %v811
          %v813 = vsel %vm807, %v801, 0.0
          %v814 = vadd.f32 %v812, %v813
          %v815 = vsel %vm807, %v802, 0.0
          %v816 = vadd.f32 %v814, %v815
          %v817 = vsel %vm807, %v803, 0.0
          %v818 = vadd.f32 %v816, %v817
          %v819 = vsel %vm807, %v804, 0.0
          %v820 = vadd.f32 %v818, %v819
          %v821 = vsel %vm807, %v805, 0.0
          %v822 = vadd.f32 %v820, %v821
          %v823 = vrot.slane %v822, 4
          %v824 = vadd.f32 %v822, %v823
          %v825 = vrot.slane %v824, 2
          %v826 = vadd.f32 %v824, %v825
          %v827 = vrot.slane %v826, 1
          %v828 = vadd.f32 %v826, %v827
          %v829 = vadd.f32 %v806, %v828
          %vm830 = vcmask 253952
          %831 = vst.msk [vmem:[%s270] sm:$0x1] %vm830, %v829
          %v832 = vld [vmem:[%s277] sm:$0x1]
          %v833 = vmul.f32 %v798, %v798
          %v834 = vmul.f32 %v799, %v799
          %v835 = vmul.f32 %v800, %v800
          %v836 = vmul.f32 %v801, %v801
          %v837 = vmul.f32 %v802, %v802
          %v838 = vmul.f32 %v803, %v803
          %v839 = vmul.f32 %v804, %v804
          %v840 = vmul.f32 %v805, %v805
          %v841 = vsel %vm807, %v833, 0.0
          %v842 = vsel %vm807, %v834, 0.0
          %v843 = vadd.f32 %v841, %v842
          %v844 = vsel %vm807, %v835, 0.0
          %v845 = vadd.f32 %v843, %v844
          %v846 = vsel %vm807, %v836, 0.0
          %v847 = vadd.f32 %v845, %v846
          %v848 = vsel %vm807, %v837, 0.0
          %v849 = vadd.f32 %v847, %v848
          %v850 = vsel %vm807, %v838, 0.0
          %v851 = vadd.f32 %v849, %v850
          %v852 = vsel %vm807, %v839, 0.0
          %v853 = vadd.f32 %v851, %v852
          %v854 = vsel %vm807, %v840, 0.0
          %v855 = vadd.f32 %v853, %v854
          %v856 = vrot.slane %v855, 4
          %v857 = vadd.f32 %v855, %v856
          %v858 = vrot.slane %v857, 2
          %v859 = vadd.f32 %v857, %v858
          %v860 = vrot.slane %v859, 1
          %v861 = vadd.f32 %v859, %v860
          %v862 = vadd.f32 %v832, %v861
          %863 = vst.msk [vmem:[%s277] sm:$0x1] %vm830, %v862
        $region48: #{tpu_custom_call.1} parent=35 // pred_fallthru
          _
        %s864 = sand.u32 %s145, 1
        %s865 = scalar_lea.sflag [#allocation3], %s864
        %s866 = sand.u32 %s145, 1
        %s867 = smul.addr %s866, 8
        %s868 = scalar_lea.vmem [#allocation2], %s867
        %s869 = sand.u32 %s171, 1
        %s870 = scalar_lea.sflag [#allocation5], %s869
        %s871 = sand.u32 %s171, 1
        %s872 = smul.addr %s871, 8
        %s873 = scalar_lea.vmem [#allocation4], %s872
        // Predicated region
        $region49: #{tpu_custom_call.1} parent=35 // pred_check
          %p874 = pneg %p155
        $region50: #{tpu_custom_call.1} parent=35 // pred_check_branch
          %876 = sbr.rel (%p874) target = $region52
        $region51: #{tpu_custom_call.1} parent=35 // pred_region
          %s878 = ssub.s32 128, 128
          %879 = vsyncadd %s865, %s878
          %s880 = smul.addr %s27, 128
          %s881 = scalar_lea.hbm %s4, %s880
          %s883 = sshll.u32 %s868, 4
          %s884 = int_to_ptr.vmem [resolvable:$true] %s883
          %886 = dma.vmem_to_hbm [thread:$0]  %s884, 128, %s881, %s865
        $region52: #{tpu_custom_call.1} parent=35 // pred_fallthru
          _
        // Predicated region
        $region53: #{tpu_custom_call.1} parent=35 // pred_check
          %p887 = pneg %p181
        $region54: #{tpu_custom_call.1} parent=35 // pred_check_branch
          %889 = sbr.rel (%p887) target = $region56
        $region55: #{tpu_custom_call.1} parent=35 // pred_region
          %s891 = ssub.s32 128, 128
          %892 = vsyncadd %s870, %s891
          %s893 = smul.addr %s27, 128
          %s894 = scalar_lea.hbm %s5, %s893
          %s896 = sshll.u32 %s873, 4
          %s897 = int_to_ptr.vmem [resolvable:$true] %s896
          %899 = dma.vmem_to_hbm [thread:$0]  %s897, 128, %s894, %s870
        $region56: #{tpu_custom_call.1} parent=35 // pred_fallthru
          _
      $region36: #{tpu_custom_call.1} parent=5 // pred_fallthru
        _
      %p900 = scmp.le.s32.totalorder 2, %s18
      // Predicated region
      $region57: #{tpu_custom_call.1} parent=5 // pred_check
        %p901 = pneg %p900
      $region58: #{tpu_custom_call.1} parent=5 // pred_check_branch
        %903 = sbr.rel (%p901) target = $region60
      $region59: #{tpu_custom_call.1} parent=5 // pred_region
        %s904 = ssub.s32 %s18, 2
        // Predicated region
        $region61: #{tpu_custom_call.1} parent=59 // pred_check
          %p905 = pneg %p161
        $region62: #{tpu_custom_call.1} parent=59 // pred_check_branch
          %907 = sbr.rel (%p905) target = $region64
        $region63: #{tpu_custom_call.1} parent=59 // pred_region
          %s908 = sand.u32 %s146, 1
          %s909 = scalar_lea.sflag [#allocation3], %s908
          %s910 = sand.u32 %s146, 1
          %s911 = smul.addr %s910, 8
          %s912 = scalar_lea.vmem [#allocation2], %s911
          %913 = dma.done %s909, 128
        $region64: #{tpu_custom_call.1} parent=59 // pred_fallthru
          _
        // Predicated region
        $region65: #{tpu_custom_call.1} parent=59 // pred_check
          %p914 = pneg %p187
        $region66: #{tpu_custom_call.1} parent=59 // pred_check_branch
          %916 = sbr.rel (%p914) target = $region68
        $region67: #{tpu_custom_call.1} parent=59 // pred_region
          %s917 = sand.u32 %s172, 1
          %s918 = scalar_lea.sflag [#allocation5], %s917
          %s919 = sand.u32 %s172, 1
          %s920 = smul.addr %s919, 8
          %s921 = scalar_lea.vmem [#allocation4], %s920
          %922 = dma.done %s918, 128
        $region68: #{tpu_custom_call.1} parent=59 // pred_fallthru
          _
      $region60: #{tpu_custom_call.1} parent=5 // pred_fallthru
        _
    $region6: #{tpu_custom_call.1} parent=1 // loop_footer
      %s22 = sadd.s32 1, %s18
    $region7: #{tpu_custom_call.1} parent=1 // loop_footer_branch
      %17 = sbr.rel target = $region3
    $region8: #{tpu_custom_call.1} parent=1 // loop_exit
      _
    %923 = vsyncpa [#allocation3], 1
    %s924 = scalar_lea.sflag [#allocation3], 1
    %925 = vsyncpa %s924, 1
    %926 = vsyncpa [#allocation5], 1
    %s927 = scalar_lea.sflag [#allocation5], 1
    %928 = vsyncpa %s927, 1

</llo_original>
